<compile_context>
chip_gen: v5e
topology: v5e:2x2
jax: 0.10.0
libtpu: 0.0.40
codegen_flags: <defaults>
</compile_context>

<pallas_src>
import functools

import jax
import jax.numpy as jnp
from jax import lax
from jax.experimental import pallas as pl
from jax.experimental.pallas import tpu as pltpu


def rnn_classifier_kernel(x_ref, wih0_ref, wihr_ref, whh_ref, bih_ref, bhh_ref,
                          fcw_ref, fcb_ref, out_ref, *scratch):
    # x_ref : [T, BPT, D] bf16, time-major embedded inputs for this batch tile.
    # scratch: one or two [T*BPT, H] bf16 ping-pong buffers (X_t / layer outputs).
    T, BPT, D = x_ref.shape
    L, _, H = whh_ref.shape

    seq_a = scratch[0]
    seq_b = scratch[1] if len(scratch) > 1 else scratch[0]

    h_last = jnp.zeros((BPT, H), jnp.float32)
    for layer in range(L):                      # static -> unrolled at trace time
        # ---- hoisted input projection: one big MXU matmul per layer ----
        if layer == 0:
            inp = x_ref[...].reshape(T * BPT, D)               # bf16 [T*BPT, D]
            w_ih = wih0_ref[...]                               # bf16 [D, H]
        else:
            inp = (seq_a if layer % 2 == 1 else seq_b)[...]    # bf16 [T*BPT, H]
            w_ih = wihr_ref[layer - 1]                         # bf16 [H, H]
        # per-layer bias read (not held live across the whole kernel)
        bias = bih_ref[pl.ds(layer, 1), :] + bhh_ref[pl.ds(layer, 1), :]  # f32 [1,H]
        out_buf = seq_a if layer % 2 == 0 else seq_b
        x_proj = jnp.dot(inp, w_ih, preferred_element_type=jnp.float32) + bias
        out_buf[...] = x_proj.astype(out_buf.dtype)            # bf16 scratch store

        w_hh = whh_ref[layer]                                  # bf16 [H, H], hoisted
        last_layer = layer == L - 1

        # ---- serial recurrence: h_t = tanh(h_{t-1} @ W_hh + X_t), f32 ----
        # TODO(synk): hold W_hh in the MXU weight regs across the loop and
        # wavefront the layers to shrink the serial chain from T*L to T+L-1.
        def step(t, h, out_buf=out_buf, w_hh=w_hh, last_layer=last_layer):
            row = pl.multiple_of(t * BPT, BPT)
            xp = out_buf[pl.ds(row, BPT), :].astype(jnp.float32)   # [BPT, H]
            hh = jnp.dot(h.astype(w_hh.dtype), w_hh,
                         preferred_element_type=jnp.float32)
            h_new = jnp.tanh(hh + xp)                              # f32 VPU/EUP
            if not last_layer:
                out_buf[pl.ds(row, BPT), :] = h_new.astype(out_buf.dtype)
            return h_new

        h_last = lax.fori_loop(0, T, step, jnp.zeros((BPT, H), jnp.float32),
                               unroll=min(T, 8))

    # ---- final linear layer on hidden[-1] (tiny -> keep f32) ----
    logits = (jnp.dot(h_last, fcw_ref[...], preferred_element_type=jnp.float32)
              + fcb_ref[...])
    out_ref[...] = logits.astype(out_ref.dtype)


def _vmem_budget_bytes():
    cap = 64 * 1024 * 1024                       # conservative fallback (v7x/TC)
    try:
        info = pltpu.get_tpu_info()
        c = getattr(info, "vmem_capacity_bytes", None)
        if c:
            cap = int(c)
    except Exception:
        pass
    return (cap * 3) // 4                        # ~48 MiB v7x, ~96 MiB v5e/v6e


def _pick_batch_tile(B, T, D, H, C, L, budget):
    """Largest bf16-sublane-aligned (multiple of 16) batch tile that fits VMEM."""
    weights = (D * H + max(L - 1, 1) * H * H + L * H * H) * 2 \
              + (2 * L * H + H * C + C) * 4
    n_scratch = 2 if L > 1 else 1
    tile = max(16, min(256, -(-B // 16) * 16))
    while tile > 16:
        foot = (weights
                + 2 * T * tile * D * 2              # double-buffered bf16 x tile
                + n_scratch * T * tile * H * 2      # bf16 ping-pong scratch
                + 2 * tile * C * 4)                 # double-buffered f32 out tile
        if foot <= budget:
            break
        tile -= 16
    return tile


def rnn_text_classifier(ids, params, *, num_layers):
    B, T = ids.shape
    emb = params["emb"]
    D = emb.shape[1]
    H = params["w_hh"].shape[-1]
    C = params["fc_b"].shape[-1]
    bf16 = jnp.bfloat16

    # Embedding lookup emitted TIME-MAJOR directly (no extra transpose pass).
    x = jnp.take(emb, ids.T, axis=0)                 # [T, B, D] f32
    # TODO(synk): in-kernel DMA gather of embedding rows for realistic vocab/B.

    budget = _vmem_budget_bytes()
    bp_tile = _pick_batch_tile(B, T, D, H, C, num_layers, budget)
    bp_total = -(-B // bp_tile) * bp_tile
    if bp_total != B:
        x = jnp.pad(x, ((0, 0), (0, bp_total - B), (0, 0)))
    x = x.astype(bf16)                               # bf16 MXU operand

    grid = (bp_total // bp_tile,)
    n_scratch = 2 if num_layers > 1 else 1

    def replicated(shape):                           # weights: same block every step
        nd = len(shape)
        return pl.BlockSpec(shape, lambda i, nd=nd: (0,) * nd)

    w_ih0 = params["w_ih0"].astype(bf16)
    w_ihr = params["w_ih_rest"].astype(bf16)
    w_hh = params["w_hh"].astype(bf16)

    logits = pl.pallas_call(
        rnn_classifier_kernel,
        out_shape=jax.ShapeDtypeStruct((bp_total, C), jnp.float32),
        grid=grid,
        in_specs=[
            pl.BlockSpec((T, bp_tile, D), lambda i: (0, i, 0)),   # x: batch-tiled
            replicated(w_ih0.shape),
            replicated(w_ihr.shape),
            replicated(w_hh.shape),
            replicated(params["b_ih"].shape),
            replicated(params["b_hh"].shape),
            replicated(params["fc_w"].shape),
            replicated(params["fc_b"].shape),
        ],
        out_specs=pl.BlockSpec((bp_tile, C), lambda i: (i, 0)),
        scratch_shapes=[pltpu.VMEM((T * bp_tile, H), bf16)] * n_scratch,
        compiler_params=pltpu.CompilerParams(
            dimension_semantics=("parallel",),
            vmem_limit_bytes=budget),
    )(x, w_ih0, w_ihr, w_hh, params["b_ih"], params["b_hh"],
      params["fc_w"], params["fc_b"])
    return logits[:B]


def init_params(key, vocab_len, inp_size, hidden_size, n_class, layer_num):
    ks = jax.random.split(key, 8)
    s = 1.0 / (hidden_size ** 0.5)
    n_rest = max(layer_num - 1, 1)
    return dict(
        emb=jax.random.normal(ks[0], (vocab_len, inp_size), jnp.float32),
        w_ih0=jax.random.uniform(ks[1], (inp_size, hidden_size), jnp.float32, -s, s),
        w_ih_rest=jax.random.uniform(ks[2], (n_rest, hidden_size, hidden_size),
                                     jnp.float32, -s, s),
        w_hh=jax.random.uniform(ks[3], (layer_num, hidden_size, hidden_size),
                                jnp.float32, -s, s),
        b_ih=jax.random.uniform(ks[4], (layer_num, hidden_size), jnp.float32, -s, s),
        b_hh=jax.random.uniform(ks[5], (layer_num, hidden_size), jnp.float32, -s, s),
        fc_w=jax.random.uniform(ks[6], (hidden_size, n_class), jnp.float32, -s, s),
        fc_b=jax.random.uniform(ks[7], (1, n_class), jnp.float32, -s, s),
    )


def reference_forward(ids, params, *, num_layers):
    # Pure-JAX reference mirroring the kernel's numerics (bf16 MXU operands,
    # f32 accumulation, bf16 inter-layer storage, f32 add/tanh/fc).
    bf16 = jnp.bfloat16
    seq = jnp.take(params["emb"], ids, axis=0).astype(bf16)        # [B, T, D]
    B, T, _ = seq.shape
    H = params["w_hh"].shape[-1]
    h_last = jnp.zeros((B, H), jnp.float32)
    for layer in range(num_layers):
        w_ih = (params["w_ih0"] if layer == 0
                else params["w_ih_rest"][layer - 1]).astype(bf16)
        w_hh = params["w_hh"][layer].astype(bf16)
        bias = params["b_ih"][layer] + params["b_hh"][layer]       # f32 [H]
        x_proj = (jnp.einsum("btd,dh->bth", seq, w_ih,
                             preferred_element_type=jnp.float32) + bias
                  ).astype(bf16)
        h = jnp.zeros((B, H), jnp.float32)
        outs = []
        for t in range(T):
            hh = jnp.dot(h.astype(bf16), w_hh, preferred_element_type=jnp.float32)
            h = jnp.tanh(hh + x_proj[:, t, :].astype(jnp.float32))
            outs.append(h.astype(bf16))
        seq = jnp.stack(outs, axis=1)
        h_last = h
    return h_last @ params["fc_w"] + params["fc_b"]


if __name__ == "__main__":
    B, T = 2, 8
    vocab_len, inp_size, hidden_size, n_class, layer_num = 50, 32, 32, 4, 2

    key = jax.random.PRNGKey(0)
    k_ids, k_params = jax.random.split(key)
    ids = jax.random.randint(k_ids, (B, T), 0, vocab_len, dtype=jnp.int32)
    params = init_params(k_params, vocab_len, inp_size, hidden_size, n_class, layer_num)

    run = jax.jit(functools.partial(rnn_text_classifier, num_layers=layer_num))
    logits = jax.block_until_ready(run(ids, params))

    ref = reference_forward(ids, params, num_layers=layer_num)
    assert logits.shape == (B, n_class)
    # Tolerance accounts for bf16 MXU operands / bf16 inter-layer storage
    # (mirrored in the reference) plus EUP-vs-XLA tanh rounding differences.
    assert jnp.allclose(logits, ref, rtol=1e-2, atol=1e-2), "mismatch vs JAX reference"

    print("KERNEL_OK")
</pallas_src>

<mosaic_0001>
module attributes {stable_mosaic.version = 11 : i64} {
  func.func @rnn_classifier_kernel(%arg0: i32, %arg1: memref<8x16x32xbf16, #tpu.memory_space<vmem>>, %arg2: memref<32x32xbf16, #tpu.memory_space<vmem>>, %arg3: memref<1x32x32xbf16, #tpu.memory_space<vmem>>, %arg4: memref<2x32x32xbf16, #tpu.memory_space<vmem>>, %arg5: memref<2x32xf32, #tpu.memory_space<vmem>>, %arg6: memref<2x32xf32, #tpu.memory_space<vmem>>, %arg7: memref<32x4xf32, #tpu.memory_space<vmem>>, %arg8: memref<1x4xf32, #tpu.memory_space<vmem>>, %arg9: memref<16x4xf32, #tpu.memory_space<vmem>>, %arg10: memref<128x32xbf16, #tpu.memory_space<vmem>>, %arg11: memref<128x32xbf16, #tpu.memory_space<vmem>>) attributes {dimension_semantics = [#tpu.dimension_semantics<parallel>], iteration_bounds = array<i64: 1>, scalar_prefetch = 0 : i64, scratch_operands = 2 : i64, tpu.core_type = #tpu.core_type<tc>, window_params = [{transform_indices = @transform_0, window_bounds = array<i64: 8, 16, 32>}, {pipeline_mode = #tpu.pipeline_mode<synchronous>, transform_indices = @transform_1, window_bounds = array<i64: 32, 32>}, {pipeline_mode = #tpu.pipeline_mode<synchronous>, transform_indices = @transform_2, window_bounds = array<i64: 1, 32, 32>}, {pipeline_mode = #tpu.pipeline_mode<synchronous>, transform_indices = @transform_3, window_bounds = array<i64: 2, 32, 32>}, {pipeline_mode = #tpu.pipeline_mode<synchronous>, transform_indices = @transform_4, window_bounds = array<i64: 2, 32>}, {pipeline_mode = #tpu.pipeline_mode<synchronous>, transform_indices = @transform_5, window_bounds = array<i64: 2, 32>}, {pipeline_mode = #tpu.pipeline_mode<synchronous>, transform_indices = @transform_6, window_bounds = array<i64: 32, 4>}, {pipeline_mode = #tpu.pipeline_mode<synchronous>, transform_indices = @transform_7, window_bounds = array<i64: 1, 4>}, {transform_indices = @transform_8, window_bounds = array<i64: 16, 4>}]} {
    %c0 = arith.constant 0 : index
    %c0_0 = arith.constant 0 : index
    %c0_1 = arith.constant 0 : index
    %0 = vector.load %arg1[%c0, %c0_0, %c0_1] : memref<8x16x32xbf16, #tpu.memory_space<vmem>>, vector<8x16x32xbf16>
    %1 = vector.shape_cast %0 : vector<8x16x32xbf16> to vector<128x32xbf16>
    %c0_2 = arith.constant 0 : index
    %c0_3 = arith.constant 0 : index
    %2 = vector.load %arg2[%c0_2, %c0_3] : memref<32x32xbf16, #tpu.memory_space<vmem>>, vector<32x32xbf16>
    %c0_4 = arith.constant 0 : index
    %c0_5 = arith.constant 0 : index
    %3 = vector.load %arg5[%c0_4, %c0_5] : memref<2x32xf32, #tpu.memory_space<vmem>>, vector<1x32xf32>
    %c0_6 = arith.constant 0 : index
    %c0_7 = arith.constant 0 : index
    %4 = vector.load %arg6[%c0_6, %c0_7] : memref<2x32xf32, #tpu.memory_space<vmem>>, vector<1x32xf32>
    %5 = arith.addf %3, %4 : vector<1x32xf32>
    %cst = arith.constant dense<0.000000e+00> : vector<128x32xf32>
    %6 = tpu.matmul %1, %2, %cst {dimension_numbers = #tpu.dot_dimension_numbers<[1], [0], [0], [1], [0, 0, 1, 1], [], []>} : vector<128x32xbf16>, vector<32x32xbf16>, vector<128x32xf32> -> vector<128x32xf32>
    %7 = vector.broadcast %5 : vector<1x32xf32> to vector<128x32xf32>
    %8 = arith.addf %6, %7 : vector<128x32xf32>
    %9 = arith.truncf %8 : vector<128x32xf32> to vector<128x32xbf16>
    %c0_8 = arith.constant 0 : index
    %c0_9 = arith.constant 0 : index
    %10 = vector.load %arg10[%c0_8, %c0_9] : memref<128x32xbf16, #tpu.memory_space<vmem>>, vector<128x32xbf16>
    tpu.vector_store %arg10[%c0_8, %c0_9], %9 {strides = array<i32>} : memref<128x32xbf16, #tpu.memory_space<vmem>>, vector<128x32xbf16>,
    %c0_10 = arith.constant 0 : index
    %c0_11 = arith.constant 0 : index
    %c0_12 = arith.constant 0 : index
    %11 = vector.load %arg4[%c0_10, %c0_11, %c0_12] : memref<2x32x32xbf16, #tpu.memory_space<vmem>>, vector<1x32x32xbf16>
    %12 = vector.shape_cast %11 : vector<1x32x32xbf16> to vector<32x32xbf16>
    %cst_13 = arith.constant 0.000000e+00 : f32
    %13 = vector.broadcast %cst_13 : f32 to vector<16x32xf32>
    %c0_i32 = arith.constant 0 : i32
    %c16_i32 = arith.constant 16 : i32
    %14 = arith.muli %c0_i32, %c16_i32 : i32
    %15 = tpu.assume_multiple %14, 16 : i32
    %16 = arith.index_cast %15 : i32 to index
    %c0_14 = arith.constant 0 : index
    %17 = vector.load %arg10[%16, %c0_14] : memref<128x32xbf16, #tpu.memory_space<vmem>>, vector<16x32xbf16>
    %18 = arith.extf %17 : vector<16x32xbf16> to vector<16x32xf32>
    %19 = arith.truncf %13 : vector<16x32xf32> to vector<16x32xbf16>
    %cst_15 = arith.constant dense<0.000000e+00> : vector<16x32xf32>
    %20 = tpu.matmul %19, %12, %cst_15 {dimension_numbers = #tpu.dot_dimension_numbers<[1], [0], [0], [1], [0, 0, 1, 1], [], []>} : vector<16x32xbf16>, vector<32x32xbf16>, vector<16x32xf32> -> vector<16x32xf32>
    %21 = arith.addf %20, %18 : vector<16x32xf32>
    %22 = math.tanh %21 : vector<16x32xf32>
    %23 = arith.truncf %22 : vector<16x32xf32> to vector<16x32xbf16>
    %24 = arith.index_cast %15 : i32 to index
    %c0_16 = arith.constant 0 : index
    %25 = vector.load %arg10[%24, %c0_16] : memref<128x32xbf16, #tpu.memory_space<vmem>>, vector<16x32xbf16>
    tpu.vector_store %arg10[%24, %c0_16], %23 {strides = array<i32>} : memref<128x32xbf16, #tpu.memory_space<vmem>>, vector<16x32xbf16>,
    %c1_i32 = arith.constant 1 : i32
    %c16_i32_17 = arith.constant 16 : i32
    %26 = arith.muli %c1_i32, %c16_i32_17 : i32
    %27 = tpu.assume_multiple %26, 16 : i32
    %28 = arith.index_cast %27 : i32 to index
    %c0_18 = arith.constant 0 : index
    %29 = vector.load %arg10[%28, %c0_18] : memref<128x32xbf16, #tpu.memory_space<vmem>>, vector<16x32xbf16>
    %30 = arith.extf %29 : vector<16x32xbf16> to vector<16x32xf32>
    %31 = arith.truncf %22 : vector<16x32xf32> to vector<16x32xbf16>
    %cst_19 = arith.constant dense<0.000000e+00> : vector<16x32xf32>
    %32 = tpu.matmul %31, %12, %cst_19 {dimension_numbers = #tpu.dot_dimension_numbers<[1], [0], [0], [1], [0, 0, 1, 1], [], []>} : vector<16x32xbf16>, vector<32x32xbf16>, vector<16x32xf32> -> vector<16x32xf32>
    %33 = arith.addf %32, %30 : vector<16x32xf32>
    %34 = math.tanh %33 : vector<16x32xf32>
    %35 = arith.truncf %34 : vector<16x32xf32> to vector<16x32xbf16>
    %36 = arith.index_cast %27 : i32 to index
    %c0_20 = arith.constant 0 : index
    %37 = vector.load %arg10[%36, %c0_20] : memref<128x32xbf16, #tpu.memory_space<vmem>>, vector<16x32xbf16>
    tpu.vector_store %arg10[%36, %c0_20], %35 {strides = array<i32>} : memref<128x32xbf16, #tpu.memory_space<vmem>>, vector<16x32xbf16>,
    %c2_i32 = arith.constant 2 : i32
    %c16_i32_21 = arith.constant 16 : i32
    %38 = arith.muli %c2_i32, %c16_i32_21 : i32
    %39 = tpu.assume_multiple %38, 16 : i32
    %40 = arith.index_cast %39 : i32 to index
    %c0_22 = arith.constant 0 : index
    %41 = vector.load %arg10[%40, %c0_22] : memref<128x32xbf16, #tpu.memory_space<vmem>>, vector<16x32xbf16>
    %42 = arith.extf %41 : vector<16x32xbf16> to vector<16x32xf32>
    %43 = arith.truncf %34 : vector<16x32xf32> to vector<16x32xbf16>
    %cst_23 = arith.constant dense<0.000000e+00> : vector<16x32xf32>
    %44 = tpu.matmul %43, %12, %cst_23 {dimension_numbers = #tpu.dot_dimension_numbers<[1], [0], [0], [1], [0, 0, 1, 1], [], []>} : vector<16x32xbf16>, vector<32x32xbf16>, vector<16x32xf32> -> vector<16x32xf32>
    %45 = arith.addf %44, %42 : vector<16x32xf32>
    %46 = math.tanh %45 : vector<16x32xf32>
    %47 = arith.truncf %46 : vector<16x32xf32> to vector<16x32xbf16>
    %48 = arith.index_cast %39 : i32 to index
    %c0_24 = arith.constant 0 : index
    %49 = vector.load %arg10[%48, %c0_24] : memref<128x32xbf16, #tpu.memory_space<vmem>>, vector<16x32xbf16>
    tpu.vector_store %arg10[%48, %c0_24], %47 {strides = array<i32>} : memref<128x32xbf16, #tpu.memory_space<vmem>>, vector<16x32xbf16>,
    %c3_i32 = arith.constant 3 : i32
    %c16_i32_25 = arith.constant 16 : i32
    %50 = arith.muli %c3_i32, %c16_i32_25 : i32
    %51 = tpu.assume_multiple %50, 16 : i32
    %52 = arith.index_cast %51 : i32 to index
    %c0_26 = arith.constant 0 : index
    %53 = vector.load %arg10[%52, %c0_26] : memref<128x32xbf16, #tpu.memory_space<vmem>>, vector<16x32xbf16>
    %54 = arith.extf %53 : vector<16x32xbf16> to vector<16x32xf32>
    %55 = arith.truncf %46 : vector<16x32xf32> to vector<16x32xbf16>
    %cst_27 = arith.constant dense<0.000000e+00> : vector<16x32xf32>
    %56 = tpu.matmul %55, %12, %cst_27 {dimension_numbers = #tpu.dot_dimension_numbers<[1], [0], [0], [1], [0, 0, 1, 1], [], []>} : vector<16x32xbf16>, vector<32x32xbf16>, vector<16x32xf32> -> vector<16x32xf32>
    %57 = arith.addf %56, %54 : vector<16x32xf32>
    %58 = math.tanh %57 : vector<16x32xf32>
    %59 = arith.truncf %58 : vector<16x32xf32> to vector<16x32xbf16>
    %60 = arith.index_cast %51 : i32 to index
    %c0_28 = arith.constant 0 : index
    %61 = vector.load %arg10[%60, %c0_28] : memref<128x32xbf16, #tpu.memory_space<vmem>>, vector<16x32xbf16>
    tpu.vector_store %arg10[%60, %c0_28], %59 {strides = array<i32>} : memref<128x32xbf16, #tpu.memory_space<vmem>>, vector<16x32xbf16>,
    %c4_i32 = arith.constant 4 : i32
    %c16_i32_29 = arith.constant 16 : i32
    %62 = arith.muli %c4_i32, %c16_i32_29 : i32
    %63 = tpu.assume_multiple %62, 16 : i32
    %64 = arith.index_cast %63 : i32 to index
    %c0_30 = arith.constant 0 : index
    %65 = vector.load %arg10[%64, %c0_30] : memref<128x32xbf16, #tpu.memory_space<vmem>>, vector<16x32xbf16>
    %66 = arith.extf %65 : vector<16x32xbf16> to vector<16x32xf32>
    %67 = arith.truncf %58 : vector<16x32xf32> to vector<16x32xbf16>
    %cst_31 = arith.constant dense<0.000000e+00> : vector<16x32xf32>
    %68 = tpu.matmul %67, %12, %cst_31 {dimension_numbers = #tpu.dot_dimension_numbers<[1], [0], [0], [1], [0, 0, 1, 1], [], []>} : vector<16x32xbf16>, vector<32x32xbf16>, vector<16x32xf32> -> vector<16x32xf32>
    %69 = arith.addf %68, %66 : vector<16x32xf32>
    %70 = math.tanh %69 : vector<16x32xf32>
    %71 = arith.truncf %70 : vector<16x32xf32> to vector<16x32xbf16>
    %72 = arith.index_cast %63 : i32 to index
    %c0_32 = arith.constant 0 : index
    %73 = vector.load %arg10[%72, %c0_32] : memref<128x32xbf16, #tpu.memory_space<vmem>>, vector<16x32xbf16>
    tpu.vector_store %arg10[%72, %c0_32], %71 {strides = array<i32>} : memref<128x32xbf16, #tpu.memory_space<vmem>>, vector<16x32xbf16>,
    %c5_i32 = arith.constant 5 : i32
    %c16_i32_33 = arith.constant 16 : i32
    %74 = arith.muli %c5_i32, %c16_i32_33 : i32
    %75 = tpu.assume_multiple %74, 16 : i32
    %76 = arith.index_cast %75 : i32 to index
    %c0_34 = arith.constant 0 : index
    %77 = vector.load %arg10[%76, %c0_34] : memref<128x32xbf16, #tpu.memory_space<vmem>>, vector<16x32xbf16>
    %78 = arith.extf %77 : vector<16x32xbf16> to vector<16x32xf32>
    %79 = arith.truncf %70 : vector<16x32xf32> to vector<16x32xbf16>
    %cst_35 = arith.constant dense<0.000000e+00> : vector<16x32xf32>
    %80 = tpu.matmul %79, %12, %cst_35 {dimension_numbers = #tpu.dot_dimension_numbers<[1], [0], [0], [1], [0, 0, 1, 1], [], []>} : vector<16x32xbf16>, vector<32x32xbf16>, vector<16x32xf32> -> vector<16x32xf32>
    %81 = arith.addf %80, %78 : vector<16x32xf32>
    %82 = math.tanh %81 : vector<16x32xf32>
    %83 = arith.truncf %82 : vector<16x32xf32> to vector<16x32xbf16>
    %84 = arith.index_cast %75 : i32 to index
    %c0_36 = arith.constant 0 : index
    %85 = vector.load %arg10[%84, %c0_36] : memref<128x32xbf16, #tpu.memory_space<vmem>>, vector<16x32xbf16>
    tpu.vector_store %arg10[%84, %c0_36], %83 {strides = array<i32>} : memref<128x32xbf16, #tpu.memory_space<vmem>>, vector<16x32xbf16>,
    %c6_i32 = arith.constant 6 : i32
    %c16_i32_37 = arith.constant 16 : i32
    %86 = arith.muli %c6_i32, %c16_i32_37 : i32
    %87 = tpu.assume_multiple %86, 16 : i32
    %88 = arith.index_cast %87 : i32 to index
    %c0_38 = arith.constant 0 : index
    %89 = vector.load %arg10[%88, %c0_38] : memref<128x32xbf16, #tpu.memory_space<vmem>>, vector<16x32xbf16>
    %90 = arith.extf %89 : vector<16x32xbf16> to vector<16x32xf32>
    %91 = arith.truncf %82 : vector<16x32xf32> to vector<16x32xbf16>
    %cst_39 = arith.constant dense<0.000000e+00> : vector<16x32xf32>
    %92 = tpu.matmul %91, %12, %cst_39 {dimension_numbers = #tpu.dot_dimension_numbers<[1], [0], [0], [1], [0, 0, 1, 1], [], []>} : vector<16x32xbf16>, vector<32x32xbf16>, vector<16x32xf32> -> vector<16x32xf32>
    %93 = arith.addf %92, %90 : vector<16x32xf32>
    %94 = math.tanh %93 : vector<16x32xf32>
    %95 = arith.truncf %94 : vector<16x32xf32> to vector<16x32xbf16>
    %96 = arith.index_cast %87 : i32 to index
    %c0_40 = arith.constant 0 : index
    %97 = vector.load %arg10[%96, %c0_40] : memref<128x32xbf16, #tpu.memory_space<vmem>>, vector<16x32xbf16>
    tpu.vector_store %arg10[%96, %c0_40], %95 {strides = array<i32>} : memref<128x32xbf16, #tpu.memory_space<vmem>>, vector<16x32xbf16>,
    %c7_i32 = arith.constant 7 : i32
    %c16_i32_41 = arith.constant 16 : i32
    %98 = arith.muli %c7_i32, %c16_i32_41 : i32
    %99 = tpu.assume_multiple %98, 16 : i32
    %100 = arith.index_cast %99 : i32 to index
    %c0_42 = arith.constant 0 : index
    %101 = vector.load %arg10[%100, %c0_42] : memref<128x32xbf16, #tpu.memory_space<vmem>>, vector<16x32xbf16>
    %102 = arith.extf %101 : vector<16x32xbf16> to vector<16x32xf32>
    %103 = arith.truncf %94 : vector<16x32xf32> to vector<16x32xbf16>
    %cst_43 = arith.constant dense<0.000000e+00> : vector<16x32xf32>
    %104 = tpu.matmul %103, %12, %cst_43 {dimension_numbers = #tpu.dot_dimension_numbers<[1], [0], [0], [1], [0, 0, 1, 1], [], []>} : vector<16x32xbf16>, vector<32x32xbf16>, vector<16x32xf32> -> vector<16x32xf32>
    %105 = arith.addf %104, %102 : vector<16x32xf32>
    %106 = math.tanh %105 : vector<16x32xf32>
    %107 = arith.truncf %106 : vector<16x32xf32> to vector<16x32xbf16>
    %108 = arith.index_cast %99 : i32 to index
    %c0_44 = arith.constant 0 : index
    %109 = vector.load %arg10[%108, %c0_44] : memref<128x32xbf16, #tpu.memory_space<vmem>>, vector<16x32xbf16>
    tpu.vector_store %arg10[%108, %c0_44], %107 {strides = array<i32>} : memref<128x32xbf16, #tpu.memory_space<vmem>>, vector<16x32xbf16>,
    %c8_i32 = arith.constant 8 : i32
    %c0_45 = arith.constant 0 : index
    %c0_46 = arith.constant 0 : index
    %110 = vector.load %arg10[%c0_45, %c0_46] : memref<128x32xbf16, #tpu.memory_space<vmem>>, vector<128x32xbf16>
    %c0_47 = arith.constant 0 : index
    %c0_48 = arith.constant 0 : index
    %c0_49 = arith.constant 0 : index
    %111 = vector.load %arg3[%c0_47, %c0_48, %c0_49] : memref<1x32x32xbf16, #tpu.memory_space<vmem>>, vector<1x32x32xbf16>
    %112 = vector.shape_cast %111 : vector<1x32x32xbf16> to vector<32x32xbf16>
    %c1 = arith.constant 1 : index
    %c0_50 = arith.constant 0 : index
    %113 = vector.load %arg5[%c1, %c0_50] : memref<2x32xf32, #tpu.memory_space<vmem>>, vector<1x32xf32>
    %c1_51 = arith.constant 1 : index
    %c0_52 = arith.constant 0 : index
    %114 = vector.load %arg6[%c1_51, %c0_52] : memref<2x32xf32, #tpu.memory_space<vmem>>, vector<1x32xf32>
    %115 = arith.addf %113, %114 : vector<1x32xf32>
    %cst_53 = arith.constant dense<0.000000e+00> : vector<128x32xf32>
    %116 = tpu.matmul %110, %112, %cst_53 {dimension_numbers = #tpu.dot_dimension_numbers<[1], [0], [0], [1], [0, 0, 1, 1], [], []>} : vector<128x32xbf16>, vector<32x32xbf16>, vector<128x32xf32> -> vector<128x32xf32>
    %117 = vector.broadcast %115 : vector<1x32xf32> to vector<128x32xf32>
    %118 = arith.addf %116, %117 : vector<128x32xf32>
    %119 = arith.truncf %118 : vector<128x32xf32> to vector<128x32xbf16>
    %c0_54 = arith.constant 0 : index
    %c0_55 = arith.constant 0 : index
    %120 = vector.load %arg11[%c0_54, %c0_55] : memref<128x32xbf16, #tpu.memory_space<vmem>>, vector<128x32xbf16>
    tpu.vector_store %arg11[%c0_54, %c0_55], %119 {strides = array<i32>} : memref<128x32xbf16, #tpu.memory_space<vmem>>, vector<128x32xbf16>,
    %c1_56 = arith.constant 1 : index
    %c0_57 = arith.constant 0 : index
    %c0_58 = arith.constant 0 : index
    %121 = vector.load %arg4[%c1_56, %c0_57, %c0_58] : memref<2x32x32xbf16, #tpu.memory_space<vmem>>, vector<1x32x32xbf16>
    %122 = vector.shape_cast %121 : vector<1x32x32xbf16> to vector<32x32xbf16>
    %cst_59 = arith.constant 0.000000e+00 : f32
    %123 = vector.broadcast %cst_59 : f32 to vector<16x32xf32>
    %c0_i32_60 = arith.constant 0 : i32
    %c16_i32_61 = arith.constant 16 : i32
    %124 = arith.muli %c0_i32_60, %c16_i32_61 : i32
    %125 = tpu.assume_multiple %124, 16 : i32
    %126 = arith.index_cast %125 : i32 to index
    %c0_62 = arith.constant 0 : index
    %127 = vector.load %arg11[%126, %c0_62] : memref<128x32xbf16, #tpu.memory_space<vmem>>, vector<16x32xbf16>
    %128 = arith.extf %127 : vector<16x32xbf16> to vector<16x32xf32>
    %129 = arith.truncf %123 : vector<16x32xf32> to vector<16x32xbf16>
    %cst_63 = arith.constant dense<0.000000e+00> : vector<16x32xf32>
    %130 = tpu.matmul %129, %122, %cst_63 {dimension_numbers = #tpu.dot_dimension_numbers<[1], [0], [0], [1], [0, 0, 1, 1], [], []>} : vector<16x32xbf16>, vector<32x32xbf16>, vector<16x32xf32> -> vector<16x32xf32>
    %131 = arith.addf %130, %128 : vector<16x32xf32>
    %132 = math.tanh %131 : vector<16x32xf32>
    %c1_i32_64 = arith.constant 1 : i32
    %c16_i32_65 = arith.constant 16 : i32
    %133 = arith.muli %c1_i32_64, %c16_i32_65 : i32
    %134 = tpu.assume_multiple %133, 16 : i32
    %135 = arith.index_cast %134 : i32 to index
    %c0_66 = arith.constant 0 : index
    %136 = vector.load %arg11[%135, %c0_66] : memref<128x32xbf16, #tpu.memory_space<vmem>>, vector<16x32xbf16>
    %137 = arith.extf %136 : vector<16x32xbf16> to vector<16x32xf32>
    %138 = arith.truncf %132 : vector<16x32xf32> to vector<16x32xbf16>
    %cst_67 = arith.constant dense<0.000000e+00> : vector<16x32xf32>
    %139 = tpu.matmul %138, %122, %cst_67 {dimension_numbers = #tpu.dot_dimension_numbers<[1], [0], [0], [1], [0, 0, 1, 1], [], []>} : vector<16x32xbf16>, vector<32x32xbf16>, vector<16x32xf32> -> vector<16x32xf32>
    %140 = arith.addf %139, %137 : vector<16x32xf32>
    %141 = math.tanh %140 : vector<16x32xf32>
    %c2_i32_68 = arith.constant 2 : i32
    %c16_i32_69 = arith.constant 16 : i32
    %142 = arith.muli %c2_i32_68, %c16_i32_69 : i32
    %143 = tpu.assume_multiple %142, 16 : i32
    %144 = arith.index_cast %143 : i32 to index
    %c0_70 = arith.constant 0 : index
    %145 = vector.load %arg11[%144, %c0_70] : memref<128x32xbf16, #tpu.memory_space<vmem>>, vector<16x32xbf16>
    %146 = arith.extf %145 : vector<16x32xbf16> to vector<16x32xf32>
    %147 = arith.truncf %141 : vector<16x32xf32> to vector<16x32xbf16>
    %cst_71 = arith.constant dense<0.000000e+00> : vector<16x32xf32>
    %148 = tpu.matmul %147, %122, %cst_71 {dimension_numbers = #tpu.dot_dimension_numbers<[1], [0], [0], [1], [0, 0, 1, 1], [], []>} : vector<16x32xbf16>, vector<32x32xbf16>, vector<16x32xf32> -> vector<16x32xf32>
    %149 = arith.addf %148, %146 : vector<16x32xf32>
    %150 = math.tanh %149 : vector<16x32xf32>
    %c3_i32_72 = arith.constant 3 : i32
    %c16_i32_73 = arith.constant 16 : i32
    %151 = arith.muli %c3_i32_72, %c16_i32_73 : i32
    %152 = tpu.assume_multiple %151, 16 : i32
    %153 = arith.index_cast %152 : i32 to index
    %c0_74 = arith.constant 0 : index
    %154 = vector.load %arg11[%153, %c0_74] : memref<128x32xbf16, #tpu.memory_space<vmem>>, vector<16x32xbf16>
    %155 = arith.extf %154 : vector<16x32xbf16> to vector<16x32xf32>
    %156 = arith.truncf %150 : vector<16x32xf32> to vector<16x32xbf16>
    %cst_75 = arith.constant dense<0.000000e+00> : vector<16x32xf32>
    %157 = tpu.matmul %156, %122, %cst_75 {dimension_numbers = #tpu.dot_dimension_numbers<[1], [0], [0], [1], [0, 0, 1, 1], [], []>} : vector<16x32xbf16>, vector<32x32xbf16>, vector<16x32xf32> -> vector<16x32xf32>
    %158 = arith.addf %157, %155 : vector<16x32xf32>
    %159 = math.tanh %158 : vector<16x32xf32>
    %c4_i32_76 = arith.constant 4 : i32
    %c16_i32_77 = arith.constant 16 : i32
    %160 = arith.muli %c4_i32_76, %c16_i32_77 : i32
    %161 = tpu.assume_multiple %160, 16 : i32
    %162 = arith.index_cast %161 : i32 to index
    %c0_78 = arith.constant 0 : index
    %163 = vector.load %arg11[%162, %c0_78] : memref<128x32xbf16, #tpu.memory_space<vmem>>, vector<16x32xbf16>
    %164 = arith.extf %163 : vector<16x32xbf16> to vector<16x32xf32>
    %165 = arith.truncf %159 : vector<16x32xf32> to vector<16x32xbf16>
    %cst_79 = arith.constant dense<0.000000e+00> : vector<16x32xf32>
    %166 = tpu.matmul %165, %122, %cst_79 {dimension_numbers = #tpu.dot_dimension_numbers<[1], [0], [0], [1], [0, 0, 1, 1], [], []>} : vector<16x32xbf16>, vector<32x32xbf16>, vector<16x32xf32> -> vector<16x32xf32>
    %167 = arith.addf %166, %164 : vector<16x32xf32>
    %168 = math.tanh %167 : vector<16x32xf32>
    %c5_i32_80 = arith.constant 5 : i32
    %c16_i32_81 = arith.constant 16 : i32
    %169 = arith.muli %c5_i32_80, %c16_i32_81 : i32
    %170 = tpu.assume_multiple %169, 16 : i32
    %171 = arith.index_cast %170 : i32 to index
    %c0_82 = arith.constant 0 : index
    %172 = vector.load %arg11[%171, %c0_82] : memref<128x32xbf16, #tpu.memory_space<vmem>>, vector<16x32xbf16>
    %173 = arith.extf %172 : vector<16x32xbf16> to vector<16x32xf32>
    %174 = arith.truncf %168 : vector<16x32xf32> to vector<16x32xbf16>
    %cst_83 = arith.constant dense<0.000000e+00> : vector<16x32xf32>
    %175 = tpu.matmul %174, %122, %cst_83 {dimension_numbers = #tpu.dot_dimension_numbers<[1], [0], [0], [1], [0, 0, 1, 1], [], []>} : vector<16x32xbf16>, vector<32x32xbf16>, vector<16x32xf32> -> vector<16x32xf32>
    %176 = arith.addf %175, %173 : vector<16x32xf32>
    %177 = math.tanh %176 : vector<16x32xf32>
    %c6_i32_84 = arith.constant 6 : i32
    %c16_i32_85 = arith.constant 16 : i32
    %178 = arith.muli %c6_i32_84, %c16_i32_85 : i32
    %179 = tpu.assume_multiple %178, 16 : i32
    %180 = arith.index_cast %179 : i32 to index
    %c0_86 = arith.constant 0 : index
    %181 = vector.load %arg11[%180, %c0_86] : memref<128x32xbf16, #tpu.memory_space<vmem>>, vector<16x32xbf16>
    %182 = arith.extf %181 : vector<16x32xbf16> to vector<16x32xf32>
    %183 = arith.truncf %177 : vector<16x32xf32> to vector<16x32xbf16>
    %cst_87 = arith.constant dense<0.000000e+00> : vector<16x32xf32>
    %184 = tpu.matmul %183, %122, %cst_87 {dimension_numbers = #tpu.dot_dimension_numbers<[1], [0], [0], [1], [0, 0, 1, 1], [], []>} : vector<16x32xbf16>, vector<32x32xbf16>, vector<16x32xf32> -> vector<16x32xf32>
    %185 = arith.addf %184, %182 : vector<16x32xf32>
    %186 = math.tanh %185 : vector<16x32xf32>
    %c7_i32_88 = arith.constant 7 : i32
    %c16_i32_89 = arith.constant 16 : i32
    %187 = arith.muli %c7_i32_88, %c16_i32_89 : i32
    %188 = tpu.assume_multiple %187, 16 : i32
    %189 = arith.index_cast %188 : i32 to index
    %c0_90 = arith.constant 0 : index
    %190 = vector.load %arg11[%189, %c0_90] : memref<128x32xbf16, #tpu.memory_space<vmem>>, vector<16x32xbf16>
    %191 = arith.extf %190 : vector<16x32xbf16> to vector<16x32xf32>
    %192 = arith.truncf %186 : vector<16x32xf32> to vector<16x32xbf16>
    %cst_91 = arith.constant dense<0.000000e+00> : vector<16x32xf32>
    %193 = tpu.matmul %192, %122, %cst_91 {dimension_numbers = #tpu.dot_dimension_numbers<[1], [0], [0], [1], [0, 0, 1, 1], [], []>} : vector<16x32xbf16>, vector<32x32xbf16>, vector<16x32xf32> -> vector<16x32xf32>
    %194 = arith.addf %193, %191 : vector<16x32xf32>
    %195 = math.tanh %194 : vector<16x32xf32>
    %c8_i32_92 = arith.constant 8 : i32
    %c0_93 = arith.constant 0 : index
    %c0_94 = arith.constant 0 : index
    %196 = vector.load %arg7[%c0_93, %c0_94] : memref<32x4xf32, #tpu.memory_space<vmem>>, vector<32x4xf32>
    %cst_95 = arith.constant dense<0.000000e+00> : vector<16x4xf32>
    %197 = tpu.matmul %195, %196, %cst_95 {dimension_numbers = #tpu.dot_dimension_numbers<[1], [0], [0], [1], [0, 0, 1, 1], [], []>} : vector<16x32xf32>, vector<32x4xf32>, vector<16x4xf32> -> vector<16x4xf32>
    %c0_96 = arith.constant 0 : index
    %c0_97 = arith.constant 0 : index
    %198 = vector.load %arg8[%c0_96, %c0_97] : memref<1x4xf32, #tpu.memory_space<vmem>>, vector<1x4xf32>
    %199 = vector.broadcast %198 : vector<1x4xf32> to vector<16x4xf32>
    %200 = arith.addf %197, %199 : vector<16x4xf32>
    %c0_98 = arith.constant 0 : index
    %c0_99 = arith.constant 0 : index
    %201 = vector.load %arg9[%c0_98, %c0_99] : memref<16x4xf32, #tpu.memory_space<vmem>>, vector<16x4xf32>
    tpu.vector_store %arg9[%c0_98, %c0_99], %200 {strides = array<i32>} : memref<16x4xf32, #tpu.memory_space<vmem>>, vector<16x4xf32>,
    return
  }
  func.func @transform_0(%arg0: i32) -> (i32, i32, i32) {
    %c0_i32 = arith.constant 0 : i32
    %c0_i32_0 = arith.constant 0 : i32
    %c0_i32_1 = arith.constant 0 : i32
    return %c0_i32, %arg0, %c0_i32_0 : i32, i32, i32
  }
  func.func @transform_1(%arg0: i32) -> (i32, i32) {
    %c0_i32 = arith.constant 0 : i32
    %c0_i32_0 = arith.constant 0 : i32
    %c0_i32_1 = arith.constant 0 : i32
    return %c0_i32, %c0_i32_0 : i32, i32
  }
  func.func @transform_2(%arg0: i32) -> (i32, i32, i32) {
    %c0_i32 = arith.constant 0 : i32
    %c0_i32_0 = arith.constant 0 : i32
    %c0_i32_1 = arith.constant 0 : i32
    %c0_i32_2 = arith.constant 0 : i32
    return %c0_i32, %c0_i32_0, %c0_i32_1 : i32, i32, i32
  }
  func.func @transform_3(%arg0: i32) -> (i32, i32, i32) {
    %c0_i32 = arith.constant 0 : i32
    %c0_i32_0 = arith.constant 0 : i32
    %c0_i32_1 = arith.constant 0 : i32
    %c0_i32_2 = arith.constant 0 : i32
    return %c0_i32, %c0_i32_0, %c0_i32_1 : i32, i32, i32
  }
  func.func @transform_4(%arg0: i32) -> (i32, i32) {
    %c0_i32 = arith.constant 0 : i32
    %c0_i32_0 = arith.constant 0 : i32
    %c0_i32_1 = arith.constant 0 : i32
    return %c0_i32, %c0_i32_0 : i32, i32
  }
  func.func @transform_5(%arg0: i32) -> (i32, i32) {
    %c0_i32 = arith.constant 0 : i32
    %c0_i32_0 = arith.constant 0 : i32
    %c0_i32_1 = arith.constant 0 : i32
    return %c0_i32, %c0_i32_0 : i32, i32
  }
  func.func @transform_6(%arg0: i32) -> (i32, i32) {
    %c0_i32 = arith.constant 0 : i32
    %c0_i32_0 = arith.constant 0 : i32
    %c0_i32_1 = arith.constant 0 : i32
    return %c0_i32, %c0_i32_0 : i32, i32
  }
  func.func @transform_7(%arg0: i32) -> (i32, i32) {
    %c0_i32 = arith.constant 0 : i32
    %c0_i32_0 = arith.constant 0 : i32
    %c0_i32_1 = arith.constant 0 : i32
    return %c0_i32, %c0_i32_0 : i32, i32
  }
  func.func @transform_8(%arg0: i32) -> (i32, i32) {
    %c0_i32 = arith.constant 0 : i32
    %c0_i32_0 = arith.constant 0 : i32
    return %arg0, %c0_i32 : i32, i32
  }
}

</mosaic_0001>

<llo_original>
// kernel: rnn_text_classifier.1
$region0: #{rnn_text_classifier.1}
  #allocation0 [shape = 'u32[]', space=smem, size = 0x4, offset = 0x4, fixed_abs, tag = 'smem constant byte address 0x4 - core index']
  #allocation1 [shape = 'u32[72,128]{1,0:T(1,128)}', space=vmem, size = 0x9000, scoped, tag = 'internal scratch']
  #allocation2 [shape = 'bf16[128,32]{1,0:T(8,128)(2,1)}', space=vmem, size = 0x8000, scoped, tag = 'scratch operand']
  #allocation3 [shape = 'bf16[128,32]{1,0:T(8,128)(2,1)}', space=vmem, size = 0x8000, scoped, tag = 'scratch operand']
  %s0 = inlined_call_operand.vmem [shape: bf16[8,16,32], index: 0, kind: input, shape index: {}]
  %s1 = inlined_call_operand.vmem [shape: bf16[32,32], index: 1, kind: input, shape index: {}]
  %s2 = inlined_call_operand.vmem [shape: bf16[1,32,32], index: 2, kind: input, shape index: {}]
  %s3 = inlined_call_operand.vmem [shape: bf16[2,32,32], index: 3, kind: input, shape index: {}]
  %s4 = inlined_call_operand.vmem [shape: f32[2,32], index: 4, kind: input, shape index: {}]
  %s5 = inlined_call_operand.vmem [shape: f32[2,32], index: 5, kind: input, shape index: {}]
  %s6 = inlined_call_operand.vmem [shape: f32[32,4], index: 6, kind: input, shape index: {}]
  %s7 = inlined_call_operand.vmem [shape: f32[1,4], index: 7, kind: input, shape index: {}]
  %s8 = inlined_call_operand.vmem [shape: f32[16,4], index: 8, kind: output, shape index: {}]
  %s9 = sld [smem:[#allocation0]]
  $region42: #{rnn_text_classifier.1} parent=0
    _
  %s11 = ssub.s32 1, %s9
  %s12 = scalar_select 0, %s11, %s9
  // Predicated region
  $region2: #{rnn_text_classifier.1} parent=0 // pred_check
    _
  $region3: #{rnn_text_classifier.1} parent=0 // pred_check_branch
    %14 = sbr.rel (0) target = $region5
  $region4: #{rnn_text_classifier.1} parent=0 // pred_region
    _
  $region5: #{rnn_text_classifier.1} parent=0 // pred_fallthru
    _
  // Predicated region
  $region6: #{rnn_text_classifier.1} parent=0 // pred_check
    _
  $region7: #{rnn_text_classifier.1} parent=0 // pred_check_branch
    %16 = sbr.rel (0) target = $region9
  $region8: #{rnn_text_classifier.1} parent=0 // pred_region
    _
  $region9: #{rnn_text_classifier.1} parent=0 // pred_fallthru
    _
  // Predicated region
  $region10: #{rnn_text_classifier.1} parent=0 // pred_check
    _
  $region11: #{rnn_text_classifier.1} parent=0 // pred_check_branch
    %18 = sbr.rel (0) target = $region13
  $region12: #{rnn_text_classifier.1} parent=0 // pred_region
    _
  $region13: #{rnn_text_classifier.1} parent=0 // pred_fallthru
    _
  // Predicated region
  $region14: #{rnn_text_classifier.1} parent=0 // pred_check
    _
  $region15: #{rnn_text_classifier.1} parent=0 // pred_check_branch
    %20 = sbr.rel (0) target = $region17
  $region16: #{rnn_text_classifier.1} parent=0 // pred_region
    _
  $region17: #{rnn_text_classifier.1} parent=0 // pred_fallthru
    _
  // Predicated region
  $region18: #{rnn_text_classifier.1} parent=0 // pred_check
    _
  $region19: #{rnn_text_classifier.1} parent=0 // pred_check_branch
    %22 = sbr.rel (0) target = $region21
  $region20: #{rnn_text_classifier.1} parent=0 // pred_region
    _
  $region21: #{rnn_text_classifier.1} parent=0 // pred_fallthru
    _
  // Predicated region
  $region22: #{rnn_text_classifier.1} parent=0 // pred_check
    _
  $region23: #{rnn_text_classifier.1} parent=0 // pred_check_branch
    %24 = sbr.rel (0) target = $region25
  $region24: #{rnn_text_classifier.1} parent=0 // pred_region
    _
  $region25: #{rnn_text_classifier.1} parent=0 // pred_fallthru
    _
  // Predicated region
  $region26: #{rnn_text_classifier.1} parent=0 // pred_check
    _
  $region27: #{rnn_text_classifier.1} parent=0 // pred_check_branch
    %26 = sbr.rel (0) target = $region29
  $region28: #{rnn_text_classifier.1} parent=0 // pred_region
    _
  $region29: #{rnn_text_classifier.1} parent=0 // pred_fallthru
    _
  // Predicated region
  $region30: #{rnn_text_classifier.1} parent=0 // pred_check
    _
  $region31: #{rnn_text_classifier.1} parent=0 // pred_check_branch
    %28 = sbr.rel (0) target = $region33
  $region32: #{rnn_text_classifier.1} parent=0 // pred_region
    _
  $region33: #{rnn_text_classifier.1} parent=0 // pred_fallthru
    _
  %v30 = vld [vmem:[%s0] sm:$0xf]
  %v31 = vld [vmem:[%s0 + $0x4] sm:$0xf]
  %v32 = vld [vmem:[%s0 + $0x8] sm:$0xf]
  %v33 = vld [vmem:[%s0 + $0xc] sm:$0xf]
  %v34 = vld [vmem:[%s0 + $0x10] sm:$0xf]
  %v35 = vld [vmem:[%s0 + $0x14] sm:$0xf]
  %v36 = vld [vmem:[%s0 + $0x18] sm:$0xf]
  %v37 = vld [vmem:[%s0 + $0x1c] sm:$0xf]
  %v38 = vld [vmem:[%s0 + $0x20] sm:$0xf]
  %v39 = vld [vmem:[%s0 + $0x24] sm:$0xf]
  %v40 = vld [vmem:[%s0 + $0x28] sm:$0xf]
  %v41 = vld [vmem:[%s0 + $0x2c] sm:$0xf]
  %v42 = vld [vmem:[%s0 + $0x30] sm:$0xf]
  %v43 = vld [vmem:[%s0 + $0x34] sm:$0xf]
  %v44 = vld [vmem:[%s0 + $0x38] sm:$0xf]
  %v45 = vld [vmem:[%s0 + $0x3c] sm:$0xf]
  %v46 = vld [vmem:[%s1] sm:$0xf]
  %v47 = vld [vmem:[%s1 + $0x4] sm:$0xf]
  %v48 = vld [vmem:[%s1 + $0x8] sm:$0xf]
  %v49 = vld [vmem:[%s1 + $0xc] sm:$0xf]
  %v50 = vld [vmem:[%s4] sm:$0x1]
  %v51 = vld [vmem:[%s5] sm:$0x1]
  %v52 = vadd.f32 %v50, %v51
  %v53 = vperm.slane %v52, 0
  %v70 = vunpack.c.l.b16 %v30
  %v71 = vunpack.c.l.b16 %v31
  %v72 = vunpack.c.l.b16 %v32
  %v73 = vunpack.c.l.b16 %v33
  %v74 = vunpack.c.l.b16 %v34
  %v75 = vunpack.c.l.b16 %v35
  %v76 = vunpack.c.l.b16 %v36
  %v77 = vunpack.c.l.b16 %v37
  %v78 = vunpack.c.l.b16 %v38
  %v79 = vunpack.c.l.b16 %v39
  %v80 = vunpack.c.l.b16 %v40
  %v81 = vunpack.c.l.b16 %v41
  %v82 = vunpack.c.l.b16 %v42
  %v83 = vunpack.c.l.b16 %v43
  %v84 = vunpack.c.l.b16 %v44
  %v85 = vunpack.c.l.b16 %v45
  %v86 = vpack.c.b16 %v71, %v70
  %v87 = vpack.c.b16 %v73, %v72
  %v88 = vpack.c.b16 %v75, %v74
  %v89 = vpack.c.b16 %v77, %v76
  %v90 = vpack.c.b16 %v79, %v78
  %v91 = vpack.c.b16 %v81, %v80
  %v92 = vpack.c.b16 %v83, %v82
  %v93 = vpack.c.b16 %v85, %v84
  %v98 = vunpack.c.l.b16 %v46
  %v99 = vunpack.c.l.b16 %v47
  %v100 = vunpack.c.l.b16 %v48
  %v101 = vunpack.c.l.b16 %v49
  %v102 = vpack.c.b16 %v99, %v98
  %v103 = vpack.c.b16 %v101, %v100
  %vm106 = vcmask 261120
  %v108 = vsel %vm106, %v86, 0
  %v111 = vsel %vm106, %v87, 0
  %v114 = vsel %vm106, %v88, 0
  %v117 = vsel %vm106, %v89, 0
  %v120 = vsel %vm106, %v90, 0
  %v123 = vsel %vm106, %v91, 0
  %v126 = vsel %vm106, %v92, 0
  %v129 = vsel %vm106, %v93, 0
  %131 = vmatpush.bf16.msra.mxu0 0
  %132 = vmatpush.bf16.msra.mxu0 0
  %133 = vmatpush.bf16.msra.mxu0 0
  %134 = vmatpush.bf16.msra.mxu0 0
  %135 = vmatpush.bf16.msra.mxu0 0
  %136 = vmatpush.bf16.msra.mxu0 0
  %137 = vmatpush.bf16.msra.mxu0 %v103
  %138 = vmatpush.bf16.msra.mxu0 %v102
  %139 = vmatmul.bf16.gmra.mxu0 %v108
  %v140 = vpop.f32.mrf.mxu0
  %v141 = vadd.f32 %v53, %v140
  %v142 = vpop.f32.mrf.mxu0
  %v143 = vadd.f32 %v53, %v142
  %144 = vmatmul.bf16.gmra.mxu0 %v111
  %v145 = vpop.f32.mrf.mxu0
  %v146 = vadd.f32 %v53, %v145
  %v147 = vpop.f32.mrf.mxu0
  %v148 = vadd.f32 %v53, %v147
  %149 = vmatmul.bf16.gmra.mxu0 %v114
  %v150 = vpop.f32.mrf.mxu0
  %v151 = vadd.f32 %v53, %v150
  %v152 = vpop.f32.mrf.mxu0
  %v153 = vadd.f32 %v53, %v152
  %154 = vmatmul.bf16.gmra.mxu0 %v117
  %v155 = vpop.f32.mrf.mxu0
  %v156 = vadd.f32 %v53, %v155
  %v157 = vpop.f32.mrf.mxu0
  %v158 = vadd.f32 %v53, %v157
  %159 = vmatmul.bf16.gmra.mxu0 %v120
  %v160 = vpop.f32.mrf.mxu0
  %v161 = vadd.f32 %v53, %v160
  %v162 = vpop.f32.mrf.mxu0
  %v163 = vadd.f32 %v53, %v162
  %164 = vmatmul.bf16.gmra.mxu0 %v123
  %v165 = vpop.f32.mrf.mxu0
  %v166 = vadd.f32 %v53, %v165
  %v167 = vpop.f32.mrf.mxu0
  %v168 = vadd.f32 %v53, %v167
  %169 = vmatmul.bf16.gmra.mxu0 %v126
  %v170 = vpop.f32.mrf.mxu0
  %v171 = vadd.f32 %v53, %v170
  %v172 = vpop.f32.mrf.mxu0
  %v173 = vadd.f32 %v53, %v172
  %174 = vmatmul.bf16.gmra.mxu0 %v129
  %v175 = vpop.f32.mrf.mxu0
  %v176 = vadd.f32 %v53, %v175
  %v177 = vpop.f32.mrf.mxu0
  %v178 = vadd.f32 %v53, %v177
  %179 = vdwg.mxu0
  %v180 = vpack.c.bf16 %v141, %v141
  %v181 = vpack.c.bf16 %v143, %v143
  %v182 = vpack.c.bf16 %v146, %v146
  %v183 = vpack.c.bf16 %v148, %v148
  %v184 = vpack.c.bf16 %v151, %v151
  %v185 = vpack.c.bf16 %v153, %v153
  %v186 = vpack.c.bf16 %v156, %v156
  %v187 = vpack.c.bf16 %v158, %v158
  %v188 = vpack.c.bf16 %v161, %v161
  %v189 = vpack.c.bf16 %v163, %v163
  %v190 = vpack.c.bf16 %v166, %v166
  %v191 = vpack.c.bf16 %v168, %v168
  %v192 = vpack.c.bf16 %v171, %v171
  %v193 = vpack.c.bf16 %v173, %v173
  %v194 = vpack.c.bf16 %v176, %v176
  %v195 = vpack.c.bf16 %v178, %v178
  %vm196 = vcmask 257024
  %197 = vst.msk [vmem:[#allocation2] sm:$0xf] %vm196, %v180
  %198 = vst.msk [vmem:[#allocation2 + $0x4] sm:$0xf] %vm196, %v181
  %199 = vst.msk [vmem:[#allocation2 + $0x8] sm:$0xf] %vm196, %v182
  %200 = vst.msk [vmem:[#allocation2 + $0xc] sm:$0xf] %vm196, %v183
  %201 = vst.msk [vmem:[#allocation2 + $0x10] sm:$0xf] %vm196, %v184
  %202 = vst.msk [vmem:[#allocation2 + $0x14] sm:$0xf] %vm196, %v185
  %203 = vst.msk [vmem:[#allocation2 + $0x18] sm:$0xf] %vm196, %v186
  %204 = vst.msk [vmem:[#allocation2 + $0x1c] sm:$0xf] %vm196, %v187
  %205 = vst.msk [vmem:[#allocation2 + $0x20] sm:$0xf] %vm196, %v188
  %206 = vst.msk [vmem:[#allocation2 + $0x24] sm:$0xf] %vm196, %v189
  %207 = vst.msk [vmem:[#allocation2 + $0x28] sm:$0xf] %vm196, %v190
  %208 = vst.msk [vmem:[#allocation2 + $0x2c] sm:$0xf] %vm196, %v191
  %209 = vst.msk [vmem:[#allocation2 + $0x30] sm:$0xf] %vm196, %v192
  %210 = vst.msk [vmem:[#allocation2 + $0x34] sm:$0xf] %vm196, %v193
  %211 = vst.msk [vmem:[#allocation2 + $0x38] sm:$0xf] %vm196, %v194
  %212 = vst.msk [vmem:[#allocation2 + $0x3c] sm:$0xf] %vm196, %v195
  %v213 = vld [vmem:[%s3] sm:$0xf]
  %v214 = vld [vmem:[%s3 + $0x4] sm:$0xf]
  %v215 = vld [vmem:[%s3 + $0x8] sm:$0xf]
  %v216 = vld [vmem:[%s3 + $0xc] sm:$0xf]
  %v217 = vld [vmem:[#allocation2] sm:$0xf]
  %v218 = vld [vmem:[#allocation2 + $0x4] sm:$0xf]
  %v219 = vunpack.c.l.bf16 %v217
  %v220 = vunpack.c.l.bf16 %v218
  %v225 = vunpack.c.l.b16 %v213
  %v226 = vunpack.c.l.b16 %v214
  %v227 = vunpack.c.l.b16 %v215
  %v228 = vunpack.c.l.b16 %v216
  %v229 = vpack.c.b16 %v226, %v225
  %v230 = vpack.c.b16 %v228, %v227
  %v234 = vsel %vm106, 0, 0
  %236 = vmatpush.bf16.msra.mxu0 0
  %237 = vmatpush.bf16.msra.mxu0 0
  %238 = vmatpush.bf16.msra.mxu0 0
  %239 = vmatpush.bf16.msra.mxu0 0
  %240 = vmatpush.bf16.msra.mxu0 0
  %241 = vmatpush.bf16.msra.mxu0 0
  %242 = vmatpush.bf16.msra.mxu0 %v230
  %243 = vmatpush.bf16.msra.mxu0 %v229
  %244 = vmatmul.bf16.gmra.mxu0 %v234
  %v245 = vpop.f32.mrf.mxu0
  %v246 = vadd.f32 %v219, %v245
  %v247 = vpop.f32.mrf.mxu0
  %v248 = vadd.f32 %v220, %v247
  %249 = vdwg.mxu0
  %v250 = vtanh.pop %v246
  %v251 = vtanh.pop %v248
  %v252 = vpack.c.bf16 %v250, %v250
  %v253 = vpack.c.bf16 %v251, %v251
  %254 = vst.msk [vmem:[#allocation2] sm:$0xf] %vm196, %v252
  %255 = vst.msk [vmem:[#allocation2 + $0x4] sm:$0xf] %vm196, %v253
  %s256 = scalar_lea.vmem [#allocation2], 8
  %v257 = vld [vmem:[%s256] sm:$0xf]
  %v258 = vld [vmem:[%s256 + $0x4] sm:$0xf]
  %v259 = vunpack.c.l.bf16 %v257
  %v260 = vunpack.c.l.bf16 %v258
  %v263 = vunpack.c.l.b16 %v252
  %v264 = vunpack.c.l.b16 %v253
  %v265 = vpack.c.b16 %v264, %v263
  %v267 = vsel %vm106, %v265, 0
  %269 = vmatpush.bf16.msra.mxu0 0
  %270 = vmatpush.bf16.msra.mxu0 0
  %271 = vmatpush.bf16.msra.mxu0 0
  %272 = vmatpush.bf16.msra.mxu0 0
  %273 = vmatpush.bf16.msra.mxu0 0
  %274 = vmatpush.bf16.msra.mxu0 0
  %275 = vmatpush.bf16.msra.mxu0 %v230
  %276 = vmatpush.bf16.msra.mxu0 %v229
  %277 = vmatmul.bf16.gmra.mxu0 %v267
  %v278 = vpop.f32.mrf.mxu0
  %v279 = vadd.f32 %v259, %v278
  %v280 = vpop.f32.mrf.mxu0
  %v281 = vadd.f32 %v260, %v280
  %282 = vdwg.mxu0
  %v283 = vtanh.pop %v279
  %v284 = vtanh.pop %v281
  %v285 = vpack.c.bf16 %v283, %v283
  %v286 = vpack.c.bf16 %v284, %v284
  %287 = vst.msk [vmem:[%s256] sm:$0xf] %vm196, %v285
  %288 = vst.msk [vmem:[%s256 + $0x4] sm:$0xf] %vm196, %v286
  %s289 = scalar_lea.vmem [#allocation2], 16
  %v290 = vld [vmem:[%s289] sm:$0xf]
  %v291 = vld [vmem:[%s289 + $0x4] sm:$0xf]
  %v292 = vunpack.c.l.bf16 %v290
  %v293 = vunpack.c.l.bf16 %v291
  %v296 = vunpack.c.l.b16 %v285
  %v297 = vunpack.c.l.b16 %v286
  %v298 = vpack.c.b16 %v297, %v296
  %v300 = vsel %vm106, %v298, 0
  %302 = vmatpush.bf16.msra.mxu0 0
  %303 = vmatpush.bf16.msra.mxu0 0
  %304 = vmatpush.bf16.msra.mxu0 0
  %305 = vmatpush.bf16.msra.mxu0 0
  %306 = vmatpush.bf16.msra.mxu0 0
  %307 = vmatpush.bf16.msra.mxu0 0
  %308 = vmatpush.bf16.msra.mxu0 %v230
  %309 = vmatpush.bf16.msra.mxu0 %v229
  %310 = vmatmul.bf16.gmra.mxu0 %v300
  %v311 = vpop.f32.mrf.mxu0
  %v312 = vadd.f32 %v292, %v311
  %v313 = vpop.f32.mrf.mxu0
  %v314 = vadd.f32 %v293, %v313
  %315 = vdwg.mxu0
  %v316 = vtanh.pop %v312
  %v317 = vtanh.pop %v314
  %v318 = vpack.c.bf16 %v316, %v316
  %v319 = vpack.c.bf16 %v317, %v317
  %320 = vst.msk [vmem:[%s289] sm:$0xf] %vm196, %v318
  %321 = vst.msk [vmem:[%s289 + $0x4] sm:$0xf] %vm196, %v319
  %s322 = scalar_lea.vmem [#allocation2], 24
  %v323 = vld [vmem:[%s322] sm:$0xf]
  %v324 = vld [vmem:[%s322 + $0x4] sm:$0xf]
  %v325 = vunpack.c.l.bf16 %v323
  %v326 = vunpack.c.l.bf16 %v324
  %v329 = vunpack.c.l.b16 %v318
  %v330 = vunpack.c.l.b16 %v319
  %v331 = vpack.c.b16 %v330, %v329
  %v333 = vsel %vm106, %v331, 0
  %335 = vmatpush.bf16.msra.mxu0 0
  %336 = vmatpush.bf16.msra.mxu0 0
  %337 = vmatpush.bf16.msra.mxu0 0
  %338 = vmatpush.bf16.msra.mxu0 0
  %339 = vmatpush.bf16.msra.mxu0 0
  %340 = vmatpush.bf16.msra.mxu0 0
  %341 = vmatpush.bf16.msra.mxu0 %v230
  %342 = vmatpush.bf16.msra.mxu0 %v229
  %343 = vmatmul.bf16.gmra.mxu0 %v333
  %v344 = vpop.f32.mrf.mxu0
  %v345 = vadd.f32 %v325, %v344
  %v346 = vpop.f32.mrf.mxu0
  %v347 = vadd.f32 %v326, %v346
  %348 = vdwg.mxu0
  %v349 = vtanh.pop %v345
  %v350 = vtanh.pop %v347
  %v351 = vpack.c.bf16 %v349, %v349
  %v352 = vpack.c.bf16 %v350, %v350
  %353 = vst.msk [vmem:[%s322] sm:$0xf] %vm196, %v351
  %354 = vst.msk [vmem:[%s322 + $0x4] sm:$0xf] %vm196, %v352
  %s355 = scalar_lea.vmem [#allocation2], 32
  %v356 = vld [vmem:[%s355] sm:$0xf]
  %v357 = vld [vmem:[%s355 + $0x4] sm:$0xf]
  %v358 = vunpack.c.l.bf16 %v356
  %v359 = vunpack.c.l.bf16 %v357
  %v362 = vunpack.c.l.b16 %v351
  %v363 = vunpack.c.l.b16 %v352
  %v364 = vpack.c.b16 %v363, %v362
  %v366 = vsel %vm106, %v364, 0
  %368 = vmatpush.bf16.msra.mxu0 0
  %369 = vmatpush.bf16.msra.mxu0 0
  %370 = vmatpush.bf16.msra.mxu0 0
  %371 = vmatpush.bf16.msra.mxu0 0
  %372 = vmatpush.bf16.msra.mxu0 0
  %373 = vmatpush.bf16.msra.mxu0 0
  %374 = vmatpush.bf16.msra.mxu0 %v230
  %375 = vmatpush.bf16.msra.mxu0 %v229
  %376 = vmatmul.bf16.gmra.mxu0 %v366
  %v377 = vpop.f32.mrf.mxu0
  %v378 = vadd.f32 %v358, %v377
  %v379 = vpop.f32.mrf.mxu0
  %v380 = vadd.f32 %v359, %v379
  %381 = vdwg.mxu0
  %v382 = vtanh.pop %v378
  %v383 = vtanh.pop %v380
  %v384 = vpack.c.bf16 %v382, %v382
  %v385 = vpack.c.bf16 %v383, %v383
  %386 = vst.msk [vmem:[%s355] sm:$0xf] %vm196, %v384
  %387 = vst.msk [vmem:[%s355 + $0x4] sm:$0xf] %vm196, %v385
  %s388 = scalar_lea.vmem [#allocation2], 40
  %v389 = vld [vmem:[%s388] sm:$0xf]
  %v390 = vld [vmem:[%s388 + $0x4] sm:$0xf]
  %v391 = vunpack.c.l.bf16 %v389
  %v392 = vunpack.c.l.bf16 %v390
  %v395 = vunpack.c.l.b16 %v384
  %v396 = vunpack.c.l.b16 %v385
  %v397 = vpack.c.b16 %v396, %v395
  %v399 = vsel %vm106, %v397, 0
  %401 = vmatpush.bf16.msra.mxu0 0
  %402 = vmatpush.bf16.msra.mxu0 0
  %403 = vmatpush.bf16.msra.mxu0 0
  %404 = vmatpush.bf16.msra.mxu0 0
  %405 = vmatpush.bf16.msra.mxu0 0
  %406 = vmatpush.bf16.msra.mxu0 0
  %407 = vmatpush.bf16.msra.mxu0 %v230
  %408 = vmatpush.bf16.msra.mxu0 %v229
  %409 = vmatmul.bf16.gmra.mxu0 %v399
  %v410 = vpop.f32.mrf.mxu0
  %v411 = vadd.f32 %v391, %v410
  %v412 = vpop.f32.mrf.mxu0
  %v413 = vadd.f32 %v392, %v412
  %414 = vdwg.mxu0
  %v415 = vtanh.pop %v411
  %v416 = vtanh.pop %v413
  %v417 = vpack.c.bf16 %v415, %v415
  %v418 = vpack.c.bf16 %v416, %v416
  %419 = vst.msk [vmem:[%s388] sm:$0xf] %vm196, %v417
  %420 = vst.msk [vmem:[%s388 + $0x4] sm:$0xf] %vm196, %v418
  %s421 = scalar_lea.vmem [#allocation2], 48
  %v422 = vld [vmem:[%s421] sm:$0xf]
  %v423 = vld [vmem:[%s421 + $0x4] sm:$0xf]
  %v424 = vunpack.c.l.bf16 %v422
  %v425 = vunpack.c.l.bf16 %v423
  %v428 = vunpack.c.l.b16 %v417
  %v429 = vunpack.c.l.b16 %v418
  %v430 = vpack.c.b16 %v429, %v428
  %v432 = vsel %vm106, %v430, 0
  %434 = vmatpush.bf16.msra.mxu0 0
  %435 = vmatpush.bf16.msra.mxu0 0
  %436 = vmatpush.bf16.msra.mxu0 0
  %437 = vmatpush.bf16.msra.mxu0 0
  %438 = vmatpush.bf16.msra.mxu0 0
  %439 = vmatpush.bf16.msra.mxu0 0
  %440 = vmatpush.bf16.msra.mxu0 %v230
  %441 = vmatpush.bf16.msra.mxu0 %v229
  %442 = vmatmul.bf16.gmra.mxu0 %v432
  %v443 = vpop.f32.mrf.mxu0
  %v444 = vadd.f32 %v424, %v443
  %v445 = vpop.f32.mrf.mxu0
  %v446 = vadd.f32 %v425, %v445
  %447 = vdwg.mxu0
  %v448 = vtanh.pop %v444
  %v449 = vtanh.pop %v446
  %v450 = vpack.c.bf16 %v448, %v448
  %v451 = vpack.c.bf16 %v449, %v449
  %452 = vst.msk [vmem:[%s421] sm:$0xf] %vm196, %v450
  %453 = vst.msk [vmem:[%s421 + $0x4] sm:$0xf] %vm196, %v451
  %s454 = scalar_lea.vmem [#allocation2], 56
  %v455 = vld [vmem:[%s454] sm:$0xf]
  %v456 = vld [vmem:[%s454 + $0x4] sm:$0xf]
  %v457 = vunpack.c.l.bf16 %v455
  %v458 = vunpack.c.l.bf16 %v456
  %v461 = vunpack.c.l.b16 %v450
  %v462 = vunpack.c.l.b16 %v451
  %v463 = vpack.c.b16 %v462, %v461
  %v465 = vsel %vm106, %v463, 0
  %467 = vmatpush.bf16.msra.mxu0 0
  %468 = vmatpush.bf16.msra.mxu0 0
  %469 = vmatpush.bf16.msra.mxu0 0
  %470 = vmatpush.bf16.msra.mxu0 0
  %471 = vmatpush.bf16.msra.mxu0 0
  %472 = vmatpush.bf16.msra.mxu0 0
  %473 = vmatpush.bf16.msra.mxu0 %v230
  %474 = vmatpush.bf16.msra.mxu0 %v229
  %475 = vmatmul.bf16.gmra.mxu0 %v465
  %v476 = vpop.f32.mrf.mxu0
  %v477 = vadd.f32 %v457, %v476
  %v478 = vpop.f32.mrf.mxu0
  %v479 = vadd.f32 %v458, %v478
  %480 = vdwg.mxu0
  %v481 = vtanh.pop %v477
  %v482 = vtanh.pop %v479
  %v483 = vpack.c.bf16 %v481, %v481
  %v484 = vpack.c.bf16 %v482, %v482
  %485 = vst.msk [vmem:[%s454] sm:$0xf] %vm196, %v483
  %486 = vst.msk [vmem:[%s454 + $0x4] sm:$0xf] %vm196, %v484
  %v487 = vld [vmem:[#allocation2] sm:$0xf]
  %v488 = vld [vmem:[#allocation2 + $0x4] sm:$0xf]
  %v489 = vld [vmem:[#allocation2 + $0x8] sm:$0xf]
  %v490 = vld [vmem:[#allocation2 + $0xc] sm:$0xf]
  %v491 = vld [vmem:[#allocation2 + $0x10] sm:$0xf]
  %v492 = vld [vmem:[#allocation2 + $0x14] sm:$0xf]
  %v493 = vld [vmem:[#allocation2 + $0x18] sm:$0xf]
  %v494 = vld [vmem:[#allocation2 + $0x1c] sm:$0xf]
  %v495 = vld [vmem:[#allocation2 + $0x20] sm:$0xf]
  %v496 = vld [vmem:[#allocation2 + $0x24] sm:$0xf]
  %v497 = vld [vmem:[#allocation2 + $0x28] sm:$0xf]
  %v498 = vld [vmem:[#allocation2 + $0x2c] sm:$0xf]
  %v499 = vld [vmem:[#allocation2 + $0x30] sm:$0xf]
  %v500 = vld [vmem:[#allocation2 + $0x34] sm:$0xf]
  %v501 = vld [vmem:[#allocation2 + $0x38] sm:$0xf]
  %v502 = vld [vmem:[#allocation2 + $0x3c] sm:$0xf]
  %v503 = vld [vmem:[%s2] sm:$0xf]
  %v504 = vld [vmem:[%s2 + $0x4] sm:$0xf]
  %v505 = vld [vmem:[%s2 + $0x8] sm:$0xf]
  %v506 = vld [vmem:[%s2 + $0xc] sm:$0xf]
  %v507 = vld [vmem:[%s4 + $0x1] sm:$0x1]
  %v508 = vld [vmem:[%s5 + $0x1] sm:$0x1]
  %v509 = vadd.f32 %v507, %v508
  %v510 = vperm.slane %v509, 0
  %v527 = vunpack.c.l.b16 %v487
  %v528 = vunpack.c.l.b16 %v488
  %v529 = vunpack.c.l.b16 %v489
  %v530 = vunpack.c.l.b16 %v490
  %v531 = vunpack.c.l.b16 %v491
  %v532 = vunpack.c.l.b16 %v492
  %v533 = vunpack.c.l.b16 %v493
  %v534 = vunpack.c.l.b16 %v494
  %v535 = vunpack.c.l.b16 %v495
  %v536 = vunpack.c.l.b16 %v496
  %v537 = vunpack.c.l.b16 %v497
  %v538 = vunpack.c.l.b16 %v498
  %v539 = vunpack.c.l.b16 %v499
  %v540 = vunpack.c.l.b16 %v500
  %v541 = vunpack.c.l.b16 %v501
  %v542 = vunpack.c.l.b16 %v502
  %v543 = vpack.c.b16 %v528, %v527
  %v544 = vpack.c.b16 %v530, %v529
  %v545 = vpack.c.b16 %v532, %v531
  %v546 = vpack.c.b16 %v534, %v533
  %v547 = vpack.c.b16 %v536, %v535
  %v548 = vpack.c.b16 %v538, %v537
  %v549 = vpack.c.b16 %v540, %v539
  %v550 = vpack.c.b16 %v542, %v541
  %v555 = vunpack.c.l.b16 %v503
  %v556 = vunpack.c.l.b16 %v504
  %v557 = vunpack.c.l.b16 %v505
  %v558 = vunpack.c.l.b16 %v506
  %v559 = vpack.c.b16 %v556, %v555
  %v560 = vpack.c.b16 %v558, %v557
  %v564 = vsel %vm106, %v543, 0
  %v567 = vsel %vm106, %v544, 0
  %v570 = vsel %vm106, %v545, 0
  %v573 = vsel %vm106, %v546, 0
  %v576 = vsel %vm106, %v547, 0
  %v579 = vsel %vm106, %v548, 0
  %v582 = vsel %vm106, %v549, 0
  %v585 = vsel %vm106, %v550, 0
  %587 = vmatpush.bf16.msra.mxu0 0
  %588 = vmatpush.bf16.msra.mxu0 0
  %589 = vmatpush.bf16.msra.mxu0 0
  %590 = vmatpush.bf16.msra.mxu0 0
  %591 = vmatpush.bf16.msra.mxu0 0
  %592 = vmatpush.bf16.msra.mxu0 0
  %593 = vmatpush.bf16.msra.mxu0 %v560
  %594 = vmatpush.bf16.msra.mxu0 %v559
  %595 = vmatmul.bf16.gmra.mxu0 %v564
  %v596 = vpop.f32.mrf.mxu0
  %v597 = vadd.f32 %v510, %v596
  %v598 = vpop.f32.mrf.mxu0
  %v599 = vadd.f32 %v510, %v598
  %600 = vmatmul.bf16.gmra.mxu0 %v567
  %v601 = vpop.f32.mrf.mxu0
  %v602 = vadd.f32 %v510, %v601
  %v603 = vpop.f32.mrf.mxu0
  %v604 = vadd.f32 %v510, %v603
  %605 = vmatmul.bf16.gmra.mxu0 %v570
  %v606 = vpop.f32.mrf.mxu0
  %v607 = vadd.f32 %v510, %v606
  %v608 = vpop.f32.mrf.mxu0
  %v609 = vadd.f32 %v510, %v608
  %610 = vmatmul.bf16.gmra.mxu0 %v573
  %v611 = vpop.f32.mrf.mxu0
  %v612 = vadd.f32 %v510, %v611
  %v613 = vpop.f32.mrf.mxu0
  %v614 = vadd.f32 %v510, %v613
  %615 = vmatmul.bf16.gmra.mxu0 %v576
  %v616 = vpop.f32.mrf.mxu0
  %v617 = vadd.f32 %v510, %v616
  %v618 = vpop.f32.mrf.mxu0
  %v619 = vadd.f32 %v510, %v618
  %620 = vmatmul.bf16.gmra.mxu0 %v579
  %v621 = vpop.f32.mrf.mxu0
  %v622 = vadd.f32 %v510, %v621
  %v623 = vpop.f32.mrf.mxu0
  %v624 = vadd.f32 %v510, %v623
  %625 = vmatmul.bf16.gmra.mxu0 %v582
  %v626 = vpop.f32.mrf.mxu0
  %v627 = vadd.f32 %v510, %v626
  %v628 = vpop.f32.mrf.mxu0
  %v629 = vadd.f32 %v510, %v628
  %630 = vmatmul.bf16.gmra.mxu0 %v585
  %v631 = vpop.f32.mrf.mxu0
  %v632 = vadd.f32 %v510, %v631
  %v633 = vpop.f32.mrf.mxu0
  %v634 = vadd.f32 %v510, %v633
  %635 = vdwg.mxu0
  %v636 = vpack.c.bf16 %v597, %v597
  %v637 = vpack.c.bf16 %v599, %v599
  %v638 = vpack.c.bf16 %v602, %v602
  %v639 = vpack.c.bf16 %v604, %v604
  %v640 = vpack.c.bf16 %v607, %v607
  %v641 = vpack.c.bf16 %v609, %v609
  %v642 = vpack.c.bf16 %v612, %v612
  %v643 = vpack.c.bf16 %v614, %v614
  %v644 = vpack.c.bf16 %v617, %v617
  %v645 = vpack.c.bf16 %v619, %v619
  %v646 = vpack.c.bf16 %v622, %v622
  %v647 = vpack.c.bf16 %v624, %v624
  %v648 = vpack.c.bf16 %v627, %v627
  %v649 = vpack.c.bf16 %v629, %v629
  %v650 = vpack.c.bf16 %v632, %v632
  %v651 = vpack.c.bf16 %v634, %v634
  %652 = vst.msk [vmem:[#allocation3] sm:$0xf] %vm196, %v636
  %653 = vst.msk [vmem:[#allocation3 + $0x4] sm:$0xf] %vm196, %v637
  %654 = vst.msk [vmem:[#allocation3 + $0x8] sm:$0xf] %vm196, %v638
  %655 = vst.msk [vmem:[#allocation3 + $0xc] sm:$0xf] %vm196, %v639
  %656 = vst.msk [vmem:[#allocation3 + $0x10] sm:$0xf] %vm196, %v640
  %657 = vst.msk [vmem:[#allocation3 + $0x14] sm:$0xf] %vm196, %v641
  %658 = vst.msk [vmem:[#allocation3 + $0x18] sm:$0xf] %vm196, %v642
  %659 = vst.msk [vmem:[#allocation3 + $0x1c] sm:$0xf] %vm196, %v643
  %660 = vst.msk [vmem:[#allocation3 + $0x20] sm:$0xf] %vm196, %v644
  %661 = vst.msk [vmem:[#allocation3 + $0x24] sm:$0xf] %vm196, %v645
  %662 = vst.msk [vmem:[#allocation3 + $0x28] sm:$0xf] %vm196, %v646
  %663 = vst.msk [vmem:[#allocation3 + $0x2c] sm:$0xf] %vm196, %v647
  %664 = vst.msk [vmem:[#allocation3 + $0x30] sm:$0xf] %vm196, %v648
  %665 = vst.msk [vmem:[#allocation3 + $0x34] sm:$0xf] %vm196, %v649
  %666 = vst.msk [vmem:[#allocation3 + $0x38] sm:$0xf] %vm196, %v650
  %667 = vst.msk [vmem:[#allocation3 + $0x3c] sm:$0xf] %vm196, %v651
  %s668 = scalar_lea.vmem %s3, 16
  %v669 = vld [vmem:[%s668] sm:$0xf]
  %v670 = vld [vmem:[%s668 + $0x4] sm:$0xf]
  %v671 = vld [vmem:[%s668 + $0x8] sm:$0xf]
  %v672 = vld [vmem:[%s668 + $0xc] sm:$0xf]
  %v673 = vld [vmem:[#allocation3] sm:$0xf]
  %v674 = vld [vmem:[#allocation3 + $0x4] sm:$0xf]
  %v675 = vunpack.c.l.bf16 %v673
  %v676 = vunpack.c.l.bf16 %v674
  %v681 = vunpack.c.l.b16 %v669
  %v682 = vunpack.c.l.b16 %v670
  %v683 = vunpack.c.l.b16 %v671
  %v684 = vunpack.c.l.b16 %v672
  %v685 = vpack.c.b16 %v682, %v681
  %v686 = vpack.c.b16 %v684, %v683
  %689 = vmatpush.bf16.msra.mxu0 0
  %690 = vmatpush.bf16.msra.mxu0 0
  %691 = vmatpush.bf16.msra.mxu0 0
  %692 = vmatpush.bf16.msra.mxu0 0
  %693 = vmatpush.bf16.msra.mxu0 0
  %694 = vmatpush.bf16.msra.mxu0 0
  %695 = vmatpush.bf16.msra.mxu0 %v686
  %696 = vmatpush.bf16.msra.mxu0 %v685
  %697 = vmatmul.bf16.gmra.mxu0 %v234
  %v698 = vpop.f32.mrf.mxu0
  %v699 = vadd.f32 %v675, %v698
  %v700 = vpop.f32.mrf.mxu0
  %v701 = vadd.f32 %v676, %v700
  %702 = vdwg.mxu0
  %v703 = vtanh.pop %v699
  %v704 = vtanh.pop %v701
  %s705 = scalar_lea.vmem [#allocation3], 8
  %v706 = vld [vmem:[%s705] sm:$0xf]
  %v707 = vld [vmem:[%s705 + $0x4] sm:$0xf]
  %v708 = vunpack.c.l.bf16 %v706
  %v709 = vunpack.c.l.bf16 %v707
  %v710 = vpack.c.bf16 %v704, %v703
  %v712 = vsel %vm106, %v710, 0
  %714 = vmatpush.bf16.msra.mxu0 0
  %715 = vmatpush.bf16.msra.mxu0 0
  %716 = vmatpush.bf16.msra.mxu0 0
  %717 = vmatpush.bf16.msra.mxu0 0
  %718 = vmatpush.bf16.msra.mxu0 0
  %719 = vmatpush.bf16.msra.mxu0 0
  %720 = vmatpush.bf16.msra.mxu0 %v686
  %721 = vmatpush.bf16.msra.mxu0 %v685
  %722 = vmatmul.bf16.gmra.mxu0 %v712
  %v723 = vpop.f32.mrf.mxu0
  %v724 = vadd.f32 %v708, %v723
  %v725 = vpop.f32.mrf.mxu0
  %v726 = vadd.f32 %v709, %v725
  %727 = vdwg.mxu0
  %v728 = vtanh.pop %v724
  %v729 = vtanh.pop %v726
  %s730 = scalar_lea.vmem [#allocation3], 16
  %v731 = vld [vmem:[%s730] sm:$0xf]
  %v732 = vld [vmem:[%s730 + $0x4] sm:$0xf]
  %v733 = vunpack.c.l.bf16 %v731
  %v734 = vunpack.c.l.bf16 %v732
  %v735 = vpack.c.bf16 %v729, %v728
  %v737 = vsel %vm106, %v735, 0
  %739 = vmatpush.bf16.msra.mxu0 0
  %740 = vmatpush.bf16.msra.mxu0 0
  %741 = vmatpush.bf16.msra.mxu0 0
  %742 = vmatpush.bf16.msra.mxu0 0
  %743 = vmatpush.bf16.msra.mxu0 0
  %744 = vmatpush.bf16.msra.mxu0 0
  %745 = vmatpush.bf16.msra.mxu0 %v686
  %746 = vmatpush.bf16.msra.mxu0 %v685
  %747 = vmatmul.bf16.gmra.mxu0 %v737
  %v748 = vpop.f32.mrf.mxu0
  %v749 = vadd.f32 %v733, %v748
  %v750 = vpop.f32.mrf.mxu0
  %v751 = vadd.f32 %v734, %v750
  %752 = vdwg.mxu0
  %v753 = vtanh.pop %v749
  %v754 = vtanh.pop %v751
  %s755 = scalar_lea.vmem [#allocation3], 24
  %v756 = vld [vmem:[%s755] sm:$0xf]
  %v757 = vld [vmem:[%s755 + $0x4] sm:$0xf]
  %v758 = vunpack.c.l.bf16 %v756
  %v759 = vunpack.c.l.bf16 %v757
  %v760 = vpack.c.bf16 %v754, %v753
  %v762 = vsel %vm106, %v760, 0
  %764 = vmatpush.bf16.msra.mxu0 0
  %765 = vmatpush.bf16.msra.mxu0 0
  %766 = vmatpush.bf16.msra.mxu0 0
  %767 = vmatpush.bf16.msra.mxu0 0
  %768 = vmatpush.bf16.msra.mxu0 0
  %769 = vmatpush.bf16.msra.mxu0 0
  %770 = vmatpush.bf16.msra.mxu0 %v686
  %771 = vmatpush.bf16.msra.mxu0 %v685
  %772 = vmatmul.bf16.gmra.mxu0 %v762
  %v773 = vpop.f32.mrf.mxu0
  %v774 = vadd.f32 %v758, %v773
  %v775 = vpop.f32.mrf.mxu0
  %v776 = vadd.f32 %v759, %v775
  %777 = vdwg.mxu0
  %v778 = vtanh.pop %v774
  %v779 = vtanh.pop %v776
  %s780 = scalar_lea.vmem [#allocation3], 32
  %v781 = vld [vmem:[%s780] sm:$0xf]
  %v782 = vld [vmem:[%s780 + $0x4] sm:$0xf]
  %v783 = vunpack.c.l.bf16 %v781
  %v784 = vunpack.c.l.bf16 %v782
  %v785 = vpack.c.bf16 %v779, %v778
  %v787 = vsel %vm106, %v785, 0
  %789 = vmatpush.bf16.msra.mxu0 0
  %790 = vmatpush.bf16.msra.mxu0 0
  %791 = vmatpush.bf16.msra.mxu0 0
  %792 = vmatpush.bf16.msra.mxu0 0
  %793 = vmatpush.bf16.msra.mxu0 0
  %794 = vmatpush.bf16.msra.mxu0 0
  %795 = vmatpush.bf16.msra.mxu0 %v686
  %796 = vmatpush.bf16.msra.mxu0 %v685
  %797 = vmatmul.bf16.gmra.mxu0 %v787
  %v798 = vpop.f32.mrf.mxu0
  %v799 = vadd.f32 %v783, %v798
  %v800 = vpop.f32.mrf.mxu0
  %v801 = vadd.f32 %v784, %v800
  %802 = vdwg.mxu0
  %v803 = vtanh.pop %v799
  %v804 = vtanh.pop %v801
  %s805 = scalar_lea.vmem [#allocation3], 40
  %v806 = vld [vmem:[%s805] sm:$0xf]
  %v807 = vld [vmem:[%s805 + $0x4] sm:$0xf]
  %v808 = vunpack.c.l.bf16 %v806
  %v809 = vunpack.c.l.bf16 %v807
  %v810 = vpack.c.bf16 %v804, %v803
  %v812 = vsel %vm106, %v810, 0
  %814 = vmatpush.bf16.msra.mxu0 0
  %815 = vmatpush.bf16.msra.mxu0 0
  %816 = vmatpush.bf16.msra.mxu0 0
  %817 = vmatpush.bf16.msra.mxu0 0
  %818 = vmatpush.bf16.msra.mxu0 0
  %819 = vmatpush.bf16.msra.mxu0 0
  %820 = vmatpush.bf16.msra.mxu0 %v686
  %821 = vmatpush.bf16.msra.mxu0 %v685
  %822 = vmatmul.bf16.gmra.mxu0 %v812
  %v823 = vpop.f32.mrf.mxu0
  %v824 = vadd.f32 %v808, %v823
  %v825 = vpop.f32.mrf.mxu0
  %v826 = vadd.f32 %v809, %v825
  %827 = vdwg.mxu0
  %v828 = vtanh.pop %v824
  %v829 = vtanh.pop %v826
  %s830 = scalar_lea.vmem [#allocation3], 48
  %v831 = vld [vmem:[%s830] sm:$0xf]
  %v832 = vld [vmem:[%s830 + $0x4] sm:$0xf]
  %v833 = vunpack.c.l.bf16 %v831
  %v834 = vunpack.c.l.bf16 %v832
  %v835 = vpack.c.bf16 %v829, %v828
  %v837 = vsel %vm106, %v835, 0
  %839 = vmatpush.bf16.msra.mxu0 0
  %840 = vmatpush.bf16.msra.mxu0 0
  %841 = vmatpush.bf16.msra.mxu0 0
  %842 = vmatpush.bf16.msra.mxu0 0
  %843 = vmatpush.bf16.msra.mxu0 0
  %844 = vmatpush.bf16.msra.mxu0 0
  %845 = vmatpush.bf16.msra.mxu0 %v686
  %846 = vmatpush.bf16.msra.mxu0 %v685
  %847 = vmatmul.bf16.gmra.mxu0 %v837
  %v848 = vpop.f32.mrf.mxu0
  %v849 = vadd.f32 %v833, %v848
  %v850 = vpop.f32.mrf.mxu0
  %v851 = vadd.f32 %v834, %v850
  %852 = vdwg.mxu0
  %v853 = vtanh.pop %v849
  %v854 = vtanh.pop %v851
  %s855 = scalar_lea.vmem [#allocation3], 56
  %v856 = vld [vmem:[%s855] sm:$0xf]
  %v857 = vld [vmem:[%s855 + $0x4] sm:$0xf]
  %v858 = vunpack.c.l.bf16 %v856
  %v859 = vunpack.c.l.bf16 %v857
  %v860 = vpack.c.bf16 %v854, %v853
  %v862 = vsel %vm106, %v860, 0
  %864 = vmatpush.bf16.msra.mxu0 0
  %865 = vmatpush.bf16.msra.mxu0 0
  %866 = vmatpush.bf16.msra.mxu0 0
  %867 = vmatpush.bf16.msra.mxu0 0
  %868 = vmatpush.bf16.msra.mxu0 0
  %869 = vmatpush.bf16.msra.mxu0 0
  %870 = vmatpush.bf16.msra.mxu0 %v686
  %871 = vmatpush.bf16.msra.mxu0 %v685
  %872 = vmatmul.bf16.gmra.mxu0 %v862
  %v873 = vpop.f32.mrf.mxu0
  %v874 = vadd.f32 %v858, %v873
  %v875 = vpop.f32.mrf.mxu0
  %v876 = vadd.f32 %v859, %v875
  %877 = vdwg.mxu0
  %v878 = vtanh.pop %v874
  %v879 = vtanh.pop %v876
  %v880 = vld [vmem:[%s6] sm:$0xff]
  %v881 = vld [vmem:[%s6 + $0x8] sm:$0xff]
  %v882 = vld [vmem:[%s6 + $0x10] sm:$0xff]
  %v883 = vld [vmem:[%s6 + $0x18] sm:$0xff]
  %v884 = vld [vmem:[%s7] sm:$0x1]
  %v886 = vperm.slane %v884, 0
  %v889 = vsel %vm106, %v878, 0
  %v892 = vsel %vm106, %v879, 0
  %894 = vmatpush.msra.mxu0 0.0
  %895 = vmatpush.msra.mxu0 0.0
  %896 = vmatpush.msra.mxu0 0.0
  %897 = vmatpush.msra.mxu0 0.0
  %898 = vmatpush.msra.mxu0 0.0
  %899 = vmatpush.msra.mxu0 0.0
  %900 = vmatpush.msra.mxu0 0.0
  %901 = vmatpush.msra.mxu0 0.0
  %902 = vmatpush.msra.mxu0 0.0
  %903 = vmatpush.msra.mxu0 0.0
  %904 = vmatpush.msra.mxu0 0.0
  %905 = vmatpush.msra.mxu0 0.0
  %906 = vmatpush.msra.mxu0 %v883
  %907 = vmatpush.msra.mxu0 %v882
  %908 = vmatpush.msra.mxu0 %v881
  %909 = vmatpush.msra.mxu0 %v880
  %910 = vmatmul.f32.gmra.mxu0 %v889
  %v911 = vpop.f32.mrf.mxu0
  %v912 = vadd.f32 %v886, %v911
  %913 = vmatmul.f32.gmra.mxu0 %v892
  %v914 = vpop.f32.mrf.mxu0
  %v915 = vadd.f32 %v886, %v914
  %916 = vdwg.mxu0
  %vm917 = vcmask 31744
  %918 = vst.msk [vmem:[%s8] sm:$0xff] %vm917, %v912
  %919 = vst.msk [vmem:[%s8 + $0x8] sm:$0xff] %vm917, %v915
  // Predicated region
  $region34: #{rnn_text_classifier.1} parent=0 // pred_check
    _
  $region35: #{rnn_text_classifier.1} parent=0 // pred_check_branch
    %921 = sbr.rel (0) target = $region37
  $region36: #{rnn_text_classifier.1} parent=0 // pred_region
    _
  $region37: #{rnn_text_classifier.1} parent=0 // pred_fallthru
    _
  // Predicated region
  $region38: #{rnn_text_classifier.1} parent=0 // pred_check
    _
  $region39: #{rnn_text_classifier.1} parent=0 // pred_check_branch
    %923 = sbr.rel (0) target = $region41
  $region40: #{rnn_text_classifier.1} parent=0 // pred_region
    _
  $region41: #{rnn_text_classifier.1} parent=0 // pred_fallthru
    _

</llo_original>
